<compile_context>
chip_gen: v7x
topology: tpu7x:2x2x1
jax: 0.10.0
libtpu: 0.0.40
codegen_flags: <defaults>
</compile_context>

<pallas_src>
import functools

import jax
import jax.numpy as jnp
from jax.experimental import pallas as pl
from jax.experimental.pallas import tpu as pltpu

TAU = 0.1


def _snn_kernel(N, K, data_ref, pA_ref, pB_ref, w_out_ref):
    f32 = jnp.float32
    K2 = 2 * K

    # ---- carve the packed param slabs (static slices = cheap views) ------
    W1 = pA_ref[0:N, :]                      # (N, 2K)  = [tW1.T | sW1.T]
    W2 = pA_ref[N:N + K2, :]                 # (2K, 2K) = blockdiag(tW2.T, sW2.T)
    b1 = pA_ref[N + K2:N + K2 + 1, :]        # (1, 2K)  = [tb1 | sb1]
    b2 = pA_ref[N + K2 + 1:N + K2 + 2, :]    # (1, 2K)  = [tb2 | sb2]
    W3 = pB_ref[0:K2, :]                     # (2K, 2N) = blockdiag(tW3.T, sW3.T/tau)
    b3 = pB_ref[K2:K2 + 1, :]                # (1, 2N)  = [tb3 | sb3/tau]

    # ---- dynamic data slab: rows [0:K)=gumbel, row K=w_tilde, rows (K:2K]=S
    g = data_ref[0:K, :]                     # (K, N)
    X = data_ref[K:2 * K + 1, :]             # (K+1, N): row0=w_tilde, rows1..K=S

    # ---- fused tilde_layer + S_layer: 3 matmuls instead of 6 -------------
    # Row 0 / cols [0:K]->[0:N] carries the tilde path, rows 1..K /
    # cols [K:2K]->[N:2N] the S path; cross terms land in columns never read.
    h = jnp.dot(X, W1, preferred_element_type=f32) + b1      # (K+1, 2K)
    h = jnp.dot(h, W2, preferred_element_type=f32) + b2      # (K+1, 2K)
    h = jnp.dot(h, W3, preferred_element_type=f32) + b3      # (K+1, 2N)

    w_tilde_new = h[0:1, 0:N]                # (1, N)
    logits = h[1:K + 1, N:2 * N]             # (K, N) == S_new / tau (pre-scaled)

    # ---- w_hat = exp(w_tilde) ---------------------------------------------
    w_hat = jnp.exp(w_tilde_new)             # (1, N)

    # ---- pi = softmax(S_new / tau, dim=-1) --------------------------------
    m = jnp.max(logits, axis=-1, keepdims=True)
    e = jnp.exp(logits - m)
    pi = e * pl.reciprocal(jnp.sum(e, axis=-1, keepdims=True), approx=True)

    # ---- z = gumbel_softmax(pi, tau, hard=True): forward value is the -----
    # one-hot argmax per row; argmax((pi+g)/tau after softmax) == argmax(pi+g)
    y = pi + g                               # (K, N)
    row_max = jnp.max(y, axis=-1, keepdims=True)
    col = jax.lax.broadcasted_iota(jnp.int32, y.shape, 1)
    cand = jnp.where(y == row_max, col, jnp.int32(N))  # first index at the max
    first = jnp.min(cand, axis=-1, keepdims=True)
    one_hot = (col == first).astype(f32)     # (K, N)

    # ---- z = sum over K rows, final exact normalisation --------------------
    z = jnp.sum(one_hot, axis=0, keepdims=True)          # (1, N)
    w_upper = w_hat * z
    w_out_ref[...] = w_upper / jnp.sum(w_upper)          # keep exact (sum==1)


def prepare_params(tilde_params, s_params, tau=TAU):
    """One-time host-side packing: transpose, block-fuse, fold 1/tau, pack.

    Returns two f32 slabs:
      pA: (N + 2K + 2, 2K)  = [W1_cat; W2_bd; b1_cat; b2_cat]
      pB: (2K + 1,     2N)  = [W3_bd ; b3_cat]
    """
    (tW1, tb1, tW2, tb2, tW3, tb3) = tilde_params
    (sW1, sb1, sW2, sb2, sW3, sb3) = s_params
    K, N = tW1.shape
    f32 = jnp.float32

    W1 = jnp.concatenate([tW1.T, sW1.T], axis=1)                       # (N, 2K)
    b1 = jnp.concatenate([tb1, sb1]).reshape(1, 2 * K)

    Zkk = jnp.zeros((K, K), f32)
    W2 = jnp.block([[tW2.T, Zkk], [Zkk, sW2.T]])                       # (2K, 2K)
    b2 = jnp.concatenate([tb2, sb2]).reshape(1, 2 * K)

    Zkn = jnp.zeros((K, N), f32)
    W3 = jnp.block([[tW3.T, Zkn], [Zkn, sW3.T / tau]])                 # (2K, 2N)
    b3 = jnp.concatenate([tb3, sb3 / tau]).reshape(1, 2 * N)

    pA = jnp.concatenate([W1, W2, b1, b2], axis=0).astype(f32)
    pB = jnp.concatenate([W3, b3], axis=0).astype(f32)
    return pA, pB


@jax.jit
def snn_forward(w_tilde, S, gumbel, pA, pB):
    """w_tilde: (N,), S: (K, N), gumbel: (K, N). Returns w: (N,)."""
    N = w_tilde.shape[0]
    K = S.shape[0]

    # single dynamic slab: [gumbel; w_tilde; S]  ->  (2K+1, N), one DMA
    data = jnp.concatenate(
        [gumbel.astype(jnp.float32),
         w_tilde.reshape(1, N).astype(jnp.float32),
         S.astype(jnp.float32)], axis=0)

    vmem = pl.BlockSpec(memory_space=pltpu.MemorySpace.VMEM)
    out = pl.pallas_call(
        functools.partial(_snn_kernel, N, K),
        out_shape=jax.ShapeDtypeStruct((1, N), jnp.float32),
        in_specs=[vmem, vmem, vmem],
        out_specs=vmem,
        cost_estimate=pl.CostEstimate(
            flops=2 * (K + 1) * (2 * N * 2 * K + 2 * K * 2 * K + 2 * K * 2 * N)
                  + 8 * K * N,
            transcendentals=(K + 1) * N,
            bytes_accessed=4 * ((2 * K + 1) * N            # data slab
                                + (N + 2 * K + 2) * 2 * K  # pA
                                + (2 * K + 1) * 2 * N      # pB
                                + N),                      # output
        ),
    )(data, pA, pB)
    return out[0]

# TODO(synk): if forward() is called for many independent scenarios, add a
# batch grid axis with dimension_semantics=("parallel",) to use both v7x TCs.


def _reference_forward(w_tilde, S, tilde_params, s_params, gumbel, tau=TAU):
    """Pure-JAX reference mirroring the PyTorch forward() on the raw params."""
    (tW1, tb1, tW2, tb2, tW3, tb3) = tilde_params
    (sW1, sb1, sW2, sb2, sW3, sb3) = s_params
    h = w_tilde @ tW1.T + tb1
    h = h @ tW2.T + tb2
    w_tilde_new = h @ tW3.T + tb3
    s = S @ sW1.T + sb1
    s = s @ sW2.T + sb2
    S_new = s @ sW3.T + sb3
    w_hat = jnp.exp(w_tilde_new)
    pi = jax.nn.softmax(S_new / tau, axis=-1)
    y_soft = jax.nn.softmax((pi + gumbel) / tau, axis=-1)
    idx = jnp.argmax(y_soft, axis=-1)
    one_hot = jax.nn.one_hot(idx, S.shape[1], dtype=jnp.float32)
    z = jnp.sum(one_hot, axis=-2)
    w_upper = w_hat * z
    return w_upper / jnp.sum(w_upper)


def _init_params(key, N, K):
    """Deterministic synthetic parameter init (shapes follow nn.Linear)."""
    def linear(k, fan_in, fan_out):
        kw, kb = jax.random.split(k)
        bound = (6.0 / (fan_in + fan_out)) ** 0.5
        W = jax.random.uniform(kw, (fan_out, fan_in), jnp.float32, -bound, bound)
        b = jax.random.uniform(kb, (fan_out,), jnp.float32, -0.1, 0.1)
        return W, b

    keys = jax.random.split(key, 7)
    tW1, tb1 = linear(keys[0], N, K)
    tW2, tb2 = linear(keys[1], K, K)
    tW3, tb3 = linear(keys[2], K, N)
    sW1, sb1 = linear(keys[3], N, K)
    sW2, sb2 = linear(keys[4], K, K)
    sW3, sb3 = linear(keys[5], K, N)

    # self.S = xavier_uniform_(torch.randn(K, N))
    bound = (6.0 / (K + N)) ** 0.5
    S0 = jax.random.uniform(keys[6], (K, N), jnp.float32, -bound, bound)
    w_tilde0 = jnp.zeros((N,), jnp.float32)   # self.w_tilde = torch.zeros(N)

    return (w_tilde0, S0,
            (tW1, tb1, tW2, tb2, tW3, tb3),
            (sW1, sb1, sW2, sb2, sW3, sb3))


if __name__ == "__main__":
    N_ASSETS = 32   # num_assets
    K_CLUST = 8     # K

    key = jax.random.PRNGKey(0)
    k_params, k_gumbel = jax.random.split(key)
    w_tilde0, S0, tilde_params, s_params = _init_params(k_params, N_ASSETS, K_CLUST)
    gumbel = jax.random.gumbel(k_gumbel, (K_CLUST, N_ASSETS), jnp.float32)

    # one-time param packing (hoisted out of the per-call path)
    pA, pB = prepare_params(tilde_params, s_params, TAU)

    w = snn_forward(w_tilde0, S0, gumbel, pA, pB)
    w = jax.block_until_ready(w)

    w_ref = _reference_forward(w_tilde0, S0, tilde_params, s_params, gumbel)
    assert w.shape == (N_ASSETS,)
    assert jnp.allclose(jnp.sum(w), 1.0, atol=1e-5)
    assert jnp.allclose(w, w_ref, atol=1e-5, rtol=1e-5)

    print("KERNEL_OK")
</pallas_src>

<mosaic_0001>
module attributes {stable_mosaic.version = 11 : i64} {
  func.func @_snn_kernel(%arg0: memref<17x32xf32, #tpu.memory_space<vmem>>, %arg1: memref<50x16xf32, #tpu.memory_space<vmem>>, %arg2: memref<17x64xf32, #tpu.memory_space<vmem>>, %arg3: memref<1x32xf32, #tpu.memory_space<vmem>>) attributes {dimension_semantics = [], scalar_prefetch = 0 : i64, scratch_operands = 0 : i64, tpu.core_type = #tpu.core_type<tc>} {
    %c0 = arith.constant 0 : index
    %c0_0 = arith.constant 0 : index
    %0 = vector.load %arg1[%c0, %c0_0] : memref<50x16xf32, #tpu.memory_space<vmem>>, vector<32x16xf32>
    %c32 = arith.constant 32 : index
    %c0_1 = arith.constant 0 : index
    %1 = vector.load %arg1[%c32, %c0_1] : memref<50x16xf32, #tpu.memory_space<vmem>>, vector<16x16xf32>
    %c48 = arith.constant 48 : index
    %c0_2 = arith.constant 0 : index
    %2 = vector.load %arg1[%c48, %c0_2] : memref<50x16xf32, #tpu.memory_space<vmem>>, vector<1x16xf32>
    %c49 = arith.constant 49 : index
    %c0_3 = arith.constant 0 : index
    %3 = vector.load %arg1[%c49, %c0_3] : memref<50x16xf32, #tpu.memory_space<vmem>>, vector<1x16xf32>
    %c0_4 = arith.constant 0 : index
    %c0_5 = arith.constant 0 : index
    %4 = vector.load %arg2[%c0_4, %c0_5] : memref<17x64xf32, #tpu.memory_space<vmem>>, vector<16x64xf32>
    %c16 = arith.constant 16 : index
    %c0_6 = arith.constant 0 : index
    %5 = vector.load %arg2[%c16, %c0_6] : memref<17x64xf32, #tpu.memory_space<vmem>>, vector<1x64xf32>
    %c0_7 = arith.constant 0 : index
    %c0_8 = arith.constant 0 : index
    %6 = vector.load %arg0[%c0_7, %c0_8] : memref<17x32xf32, #tpu.memory_space<vmem>>, vector<8x32xf32>
    %c8 = arith.constant 8 : index
    %c0_9 = arith.constant 0 : index
    %7 = vector.load %arg0[%c8, %c0_9] : memref<17x32xf32, #tpu.memory_space<vmem>>, vector<9x32xf32>
    %cst = arith.constant dense<0.000000e+00> : vector<9x16xf32>
    %8 = tpu.matmul %7, %0, %cst {dimension_numbers = #tpu.dot_dimension_numbers<[1], [0], [0], [1], [0, 0, 1, 1], [], []>} : vector<9x32xf32>, vector<32x16xf32>, vector<9x16xf32> -> vector<9x16xf32>
    %9 = vector.broadcast %2 : vector<1x16xf32> to vector<9x16xf32>
    %10 = arith.addf %8, %9 : vector<9x16xf32>
    %cst_10 = arith.constant dense<0.000000e+00> : vector<9x16xf32>
    %11 = tpu.matmul %10, %1, %cst_10 {dimension_numbers = #tpu.dot_dimension_numbers<[1], [0], [0], [1], [0, 0, 1, 1], [], []>} : vector<9x16xf32>, vector<16x16xf32>, vector<9x16xf32> -> vector<9x16xf32>
    %12 = vector.broadcast %3 : vector<1x16xf32> to vector<9x16xf32>
    %13 = arith.addf %11, %12 : vector<9x16xf32>
    %cst_11 = arith.constant dense<0.000000e+00> : vector<9x64xf32>
    %14 = tpu.matmul %13, %4, %cst_11 {dimension_numbers = #tpu.dot_dimension_numbers<[1], [0], [0], [1], [0, 0, 1, 1], [], []>} : vector<9x16xf32>, vector<16x64xf32>, vector<9x64xf32> -> vector<9x64xf32>
    %15 = vector.broadcast %5 : vector<1x64xf32> to vector<9x64xf32>
    %16 = arith.addf %14, %15 : vector<9x64xf32>
    %17 = vector.extract_strided_slice %16 {offsets = [0, 0], sizes = [1, 32], strides = [1, 1]} : vector<9x64xf32> to vector<1x32xf32>
    %18 = vector.extract_strided_slice %16 {offsets = [1, 32], sizes = [8, 32], strides = [1, 1]} : vector<9x64xf32> to vector<8x32xf32>
    %19 = math.exp %17 : vector<1x32xf32>
    %cst_12 = arith.constant dense<0xFF800000> : vector<8xf32>
    %20 = vector.multi_reduction <maximumf>, %18, %cst_12 [1] : vector<8x32xf32> to vector<8xf32>
    %21 = vector.shape_cast %20 : vector<8xf32> to vector<8x1xf32>
    %22 = vector.broadcast %21 : vector<8x1xf32> to vector<8x32xf32>
    %23 = arith.subf %18, %22 : vector<8x32xf32>
    %24 = math.exp %23 : vector<8x32xf32>
    %cst_13 = arith.constant dense<0.000000e+00> : vector<8xf32>
    %25 = vector.multi_reduction <add>, %24, %cst_13 [1] : vector<8x32xf32> to vector<8xf32>
    %26 = vector.shape_cast %25 : vector<8xf32> to vector<8x1xf32>
    %27 = tpu.reciprocal %26 {approx = true} : vector<8x1xf32> -> vector<8x1xf32>
    %28 = vector.broadcast %27 : vector<8x1xf32> to vector<8x32xf32>
    %29 = arith.mulf %24, %28 : vector<8x32xf32>
    %30 = arith.addf %29, %6 : vector<8x32xf32>
    %cst_14 = arith.constant dense<0xFF800000> : vector<8xf32>
    %31 = vector.multi_reduction <maximumf>, %30, %cst_14 [1] : vector<8x32xf32> to vector<8xf32>
    %32 = vector.shape_cast %31 : vector<8xf32> to vector<8x1xf32>
    %33 = tpu.iota {dimensions = array<i32: 1>} : vector<8x32xi32>
    %34 = vector.broadcast %32 : vector<8x1xf32> to vector<8x32xf32>
    %35 = arith.cmpf oeq, %30, %34 : vector<8x32xf32>
    %c32_i32 = arith.constant 32 : i32
    %36 = vector.broadcast %c32_i32 : i32 to vector<8x32xi32>
    %37 = arith.select %35, %33, %36 : vector<8x32xi1>, vector<8x32xi32>
    %cst_15 = arith.constant dense<2147483647> : vector<8xi32>
    %38 = vector.multi_reduction <minsi>, %37, %cst_15 [1] : vector<8x32xi32> to vector<8xi32>
    %39 = vector.shape_cast %38 : vector<8xi32> to vector<8x1xi32>
    %40 = vector.broadcast %39 : vector<8x1xi32> to vector<8x32xi32>
    %41 = arith.cmpi eq, %33, %40 : vector<8x32xi32>
    %42 = arith.extui %41 : vector<8x32xi1> to vector<8x32xi32>
    %43 = arith.sitofp %42 : vector<8x32xi32> to vector<8x32xf32>
    %cst_16 = arith.constant dense<0.000000e+00> : vector<32xf32>
    %44 = vector.multi_reduction <add>, %43, %cst_16 [0] : vector<8x32xf32> to vector<32xf32>
    %45 = vector.shape_cast %44 : vector<32xf32> to vector<1x32xf32>
    %46 = arith.mulf %19, %45 : vector<1x32xf32>
    %47 = vector.shape_cast %46 : vector<1x32xf32> to vector<1x1x32xf32>
    %cst_17 = arith.constant dense<0.000000e+00> : vector<1xf32>
    %48 = vector.multi_reduction <add>, %47, %cst_17 [1, 2] : vector<1x1x32xf32> to vector<1xf32>
    %49 = vector.shape_cast %48 : vector<1xf32> to vector<1x1x1xf32>
    %50 = vector.extract %49[0, 0, 0] : f32 from vector<1x1x1xf32>
    %51 = vector.broadcast %50 : f32 to vector<1x32xf32>
    %52 = arith.divf %46, %51 : vector<1x32xf32>
    %c0_18 = arith.constant 0 : index
    %c0_19 = arith.constant 0 : index
    %53 = vector.load %arg3[%c0_18, %c0_19] : memref<1x32xf32, #tpu.memory_space<vmem>>, vector<1x32xf32>
    tpu.vector_store %arg3[%c0_18, %c0_19], %52 {strides = array<i32>} : memref<1x32xf32, #tpu.memory_space<vmem>>, vector<1x32xf32>,
    return
  }
}

</mosaic_0001>

<llo_original>
// kernel: snn_forward.1
$region0: #{snn_forward.1}
  #allocation0 [shape = 'u32[]', space=smem, size = 0x4, offset = 0x4, fixed_abs, tag = 'smem constant byte address 0x4 - core index']
  #allocation1 [shape = 'u32[144,128]{1,0:T(1,128)}', space=vmem, size = 0x12000, scoped, tag = 'internal scratch']
  %s0 = inlined_call_operand.vmem [shape: f32[17,32], index: 0, kind: input, shape index: {}]
  %s1 = inlined_call_operand.vmem [shape: f32[50,16], index: 1, kind: input, shape index: {}]
  %s2 = inlined_call_operand.vmem [shape: f32[17,64], index: 2, kind: input, shape index: {}]
  %s3 = inlined_call_operand.hbm [shape: f32[1,32], index: 3, kind: output, shape index: {}]
  %s4 = sld [smem:[#allocation0]]
  $region22: #{snn_forward.1} parent=0
    _
  %s6 = ssub.s32 1, %s4
  %s7 = scalar_select 0, %s6, %s4
  $region1: #{snn_forward.1} parent=0
    #allocation2 [shape = 'u8[512]{0}', space=vmem, size = 0x400, scoped, tag = 'output window, operand 0, single buffered']
    #allocation3 [shape = 's32[1]{0}', space=sflag, size = 0x4, scoped, tag = 'scoped memory for snn_forward.1']
    %8 = vsyncpa [#allocation3], 0
    // Predicated region
    $region2: #{snn_forward.1} parent=1 // pred_check
      _
    $region3: #{snn_forward.1} parent=1 // pred_check_branch
      %10 = sbr.rel (0) target = $region5
    $region4: #{snn_forward.1} parent=1 // pred_region
      _
    $region5: #{snn_forward.1} parent=1 // pred_fallthru
      _
    // Predicated region
    $region6: #{snn_forward.1} parent=1 // pred_check
      _
    $region7: #{snn_forward.1} parent=1 // pred_check_branch
      %12 = sbr.rel (0) target = $region9
    $region8: #{snn_forward.1} parent=1 // pred_region
      _
    $region9: #{snn_forward.1} parent=1 // pred_fallthru
      _
    // Predicated region
    $region10: #{snn_forward.1} parent=1 // pred_check
      _
    $region11: #{snn_forward.1} parent=1 // pred_check_branch
      %14 = sbr.rel (0) target = $region13
    $region12: #{snn_forward.1} parent=1 // pred_region
      _
    $region13: #{snn_forward.1} parent=1 // pred_fallthru
      _
    %v15 = vld [vmem:[%s1] sm:$0xff]
    %v16 = vld [vmem:[%s1 + $0x8] sm:$0xff]
    %v17 = vld [vmem:[%s1 + $0x10] sm:$0xff]
    %v18 = vld [vmem:[%s1 + $0x18] sm:$0xff]
    %v19 = vld [vmem:[%s1 + $0x20] sm:$0xff]
    %v20 = vld [vmem:[%s1 + $0x28] sm:$0xff]
    %v21 = vld [vmem:[%s1 + $0x30] sm:$0x1]
    %v22 = vld [vmem:[%s1 + $0x31] sm:$0x1]
    %v23 = vld [vmem:[%s2] sm:$0xff]
    %v24 = vld [vmem:[%s2 + $0x8] sm:$0xff]
    %v25 = vld [vmem:[%s2 + $0x10] sm:$0x1]
    %v26 = vld [vmem:[%s0] sm:$0xff]
    %v27 = vld [vmem:[%s0 + $0x8] sm:$0xff]
    %v28 = vld [vmem:[%s0 + $0x10] sm:$0x1]
    %v29 = vlaneseq
    %v30 = vshrl.u32 %v29, 7
    %v31 = vsub.s32 0, %v30
    %v32 = vrot.slane %v21, %v31
    %vm33 = vcmask 261120
    %v35 = vsel %vm33, %v27, 0
    %v38 = vsel %vm33, %v28, 0
    %40 = vmatprep.subr.mxu0 0.0
    %41 = vmatpush1.msra.mxu0 %v15
    %42 = vmatprep.subr.mxu0 0.0
    %43 = vmatpush1.msra.mxu0 %v16
    %44 = vmatprep.subr.mxu0 0.0
    %45 = vmatpush1.msra.mxu0 %v17
    %46 = vmatprep.subr.mxu0 0.0
    %47 = vmatpush1.msra.mxu0 %v18
    %48 = vmatprep.subr.mxu0 0.0
    %49 = vmatpush1.msra.mxu0 0.0
    %50 = vmatprep.subr.mxu0 0.0
    %51 = vmatpush1.msra.mxu0 0.0
    %52 = vmatprep.subr.mxu0 0.0
    %53 = vmatpush1.msra.mxu0 0.0
    %54 = vmatprep.subr.mxu0 0.0
    %55 = vmatpush1.msra.mxu0 0.0
    %56 = vmatprep.subr.mxu0 0.0
    %57 = vmatpush1.msra.mxu0 0.0
    %58 = vmatprep.subr.mxu0 0.0
    %59 = vmatpush1.msra.mxu0 0.0
    %60 = vmatprep.subr.mxu0 0.0
    %61 = vmatpush1.msra.mxu0 0.0
    %62 = vmatprep.subr.mxu0 0.0
    %63 = vmatpush1.msra.mxu0 0.0
    %64 = vmatprep.subr.mxu0 0.0
    %65 = vmatpush1.msra.mxu0 0.0
    %66 = vmatprep.subr.mxu0 0.0
    %67 = vmatpush1.msra.mxu0 0.0
    %68 = vmatprep.subr.mxu0 0.0
    %69 = vmatpush1.msra.mxu0 0.0
    %70 = vmatprep.subr.mxu0 0.0
    %71 = vmatpush1.msra.mxu0 0.0
    %72 = vmatprep.subr.mxu0 0.0
    %73 = vmatpush1.msra.mxu0 0.0
    %74 = vmatprep.subr.mxu0 0.0
    %75 = vmatpush1.msra.mxu0 0.0
    %76 = vmatprep.subr.mxu0 0.0
    %77 = vmatpush1.msra.mxu0 0.0
    %78 = vmatprep.subr.mxu0 0.0
    %79 = vmatpush1.msra.mxu0 0.0
    %80 = vmatprep.subr.mxu0 0.0
    %81 = vmatpush1.msra.mxu0 0.0
    %82 = vmatprep.subr.mxu0 0.0
    %83 = vmatpush1.msra.mxu0 0.0
    %84 = vmatprep.subr.mxu0 0.0
    %85 = vmatpush1.msra.mxu0 0.0
    %86 = vmatprep.subr.mxu0 0.0
    %87 = vmatpush1.msra.mxu0 0.0
    %88 = vmatprep.subr.mxu0 0.0
    %89 = vmatpush1.msra.mxu0 0.0
    %90 = vmatprep.subr.mxu0 0.0
    %91 = vmatpush1.msra.mxu0 0.0
    %92 = vmatprep.subr.mxu0 0.0
    %93 = vmatpush1.msra.mxu0 0.0
    %94 = vmatprep.subr.mxu0 0.0
    %95 = vmatpush1.msra.mxu0 0.0
    %96 = vmatprep.subr.mxu0 0.0
    %97 = vmatpush1.msra.mxu0 0.0
    %98 = vmatprep.subr.mxu0 0.0
    %99 = vmatpush1.msra.mxu0 0.0
    %100 = vmatprep.subr.mxu0 0.0
    %101 = vmatpush1.msra.mxu0 0.0
    %102 = vmatprep.subr.mxu0 0.0
    %103 = vmatpush1.msra.mxu0 0.0
    %104 = vmatprep.mubr.f32.mxu0 0.0
    %105 = vmatmul.mubr.f32.gmra.mrb[0].mxu0 %v35
    %v106 = vpop.f32.mrb[0].mxu0
    %v107 = vadd.f32 %v32, %v106
    %v108 = vpop.f32.mrb[0].mxu0
    %109 = vmatprep.mubr.f32.mxu0 0.0
    %110 = vmatmul.mubr.f32.gmra.mrb[0].mxu0 %v38
    %v111 = vpop.f32.mrb[0].mxu0
    %v112 = vadd.f32 %v32, %v111
    %v113 = vpop.f32.mrb[0].mxu0
    %114 = vdwg.mxu0
    %v115 = vlaneseq
    %v116 = vshrl.u32 %v115, 7
    %v117 = vsub.s32 0, %v116
    %v118 = vrot.slane %v22, %v117
    %vm119 = vcmask 130048
    %v121 = vsel %vm119, %v107, 0
    %v124 = vsel %vm119, %v112, 0
    %126 = vmatprep.subr.mxu0 0.0
    %127 = vmatpush1.msra.mxu0 %v19
    %128 = vmatprep.subr.mxu0 0.0
    %129 = vmatpush1.msra.mxu0 %v20
    %130 = vmatprep.subr.mxu0 0.0
    %131 = vmatpush1.msra.mxu0 0.0
    %132 = vmatprep.subr.mxu0 0.0
    %133 = vmatpush1.msra.mxu0 0.0
    %134 = vmatprep.subr.mxu0 0.0
    %135 = vmatpush1.msra.mxu0 0.0
    %136 = vmatprep.subr.mxu0 0.0
    %137 = vmatpush1.msra.mxu0 0.0
    %138 = vmatprep.subr.mxu0 0.0
    %139 = vmatpush1.msra.mxu0 0.0
    %140 = vmatprep.subr.mxu0 0.0
    %141 = vmatpush1.msra.mxu0 0.0
    %142 = vmatprep.subr.mxu0 0.0
    %143 = vmatpush1.msra.mxu0 0.0
    %144 = vmatprep.subr.mxu0 0.0
    %145 = vmatpush1.msra.mxu0 0.0
    %146 = vmatprep.subr.mxu0 0.0
    %147 = vmatpush1.msra.mxu0 0.0
    %148 = vmatprep.subr.mxu0 0.0
    %149 = vmatpush1.msra.mxu0 0.0
    %150 = vmatprep.subr.mxu0 0.0
    %151 = vmatpush1.msra.mxu0 0.0
    %152 = vmatprep.subr.mxu0 0.0
    %153 = vmatpush1.msra.mxu0 0.0
    %154 = vmatprep.subr.mxu0 0.0
    %155 = vmatpush1.msra.mxu0 0.0
    %156 = vmatprep.subr.mxu0 0.0
    %157 = vmatpush1.msra.mxu0 0.0
    %158 = vmatprep.subr.mxu0 0.0
    %159 = vmatpush1.msra.mxu0 0.0
    %160 = vmatprep.subr.mxu0 0.0
    %161 = vmatpush1.msra.mxu0 0.0
    %162 = vmatprep.subr.mxu0 0.0
    %163 = vmatpush1.msra.mxu0 0.0
    %164 = vmatprep.subr.mxu0 0.0
    %165 = vmatpush1.msra.mxu0 0.0
    %166 = vmatprep.subr.mxu0 0.0
    %167 = vmatpush1.msra.mxu0 0.0
    %168 = vmatprep.subr.mxu0 0.0
    %169 = vmatpush1.msra.mxu0 0.0
    %170 = vmatprep.subr.mxu0 0.0
    %171 = vmatpush1.msra.mxu0 0.0
    %172 = vmatprep.subr.mxu0 0.0
    %173 = vmatpush1.msra.mxu0 0.0
    %174 = vmatprep.subr.mxu0 0.0
    %175 = vmatpush1.msra.mxu0 0.0
    %176 = vmatprep.subr.mxu0 0.0
    %177 = vmatpush1.msra.mxu0 0.0
    %178 = vmatprep.subr.mxu0 0.0
    %179 = vmatpush1.msra.mxu0 0.0
    %180 = vmatprep.subr.mxu0 0.0
    %181 = vmatpush1.msra.mxu0 0.0
    %182 = vmatprep.subr.mxu0 0.0
    %183 = vmatpush1.msra.mxu0 0.0
    %184 = vmatprep.subr.mxu0 0.0
    %185 = vmatpush1.msra.mxu0 0.0
    %186 = vmatprep.subr.mxu0 0.0
    %187 = vmatpush1.msra.mxu0 0.0
    %188 = vmatprep.subr.mxu0 0.0
    %189 = vmatpush1.msra.mxu0 0.0
    %190 = vmatprep.mubr.f32.mxu0 0.0
    %191 = vmatmul.mubr.f32.gmra.mrb[0].mxu0 %v121
    %v192 = vpop.f32.mrb[0].mxu0
    %v193 = vadd.f32 %v118, %v192
    %v194 = vpop.f32.mrb[0].mxu0
    %195 = vmatprep.mubr.f32.mxu0 0.0
    %196 = vmatmul.mubr.f32.gmra.mrb[0].mxu0 %v124
    %v197 = vpop.f32.mrb[0].mxu0
    %v198 = vadd.f32 %v118, %v197
    %v199 = vpop.f32.mrb[0].mxu0
    %200 = vdwg.mxu0
    %v201 = vlaneseq
    %v202 = vshrl.u32 %v201, 7
    %v203 = vsub.s32 0, %v202
    %v204 = vrot.slane %v25, %v203
    %v206 = vsel %vm119, %v193, 0
    %v209 = vsel %vm119, %v198, 0
    %211 = vmatprep.subr.mxu0 0.0
    %212 = vmatpush1.msra.mxu0 %v23
    %213 = vmatprep.subr.mxu0 0.0
    %214 = vmatpush1.msra.mxu0 %v24
    %215 = vmatprep.subr.mxu0 0.0
    %216 = vmatpush1.msra.mxu0 0.0
    %217 = vmatprep.subr.mxu0 0.0
    %218 = vmatpush1.msra.mxu0 0.0
    %219 = vmatprep.subr.mxu0 0.0
    %220 = vmatpush1.msra.mxu0 0.0
    %221 = vmatprep.subr.mxu0 0.0
    %222 = vmatpush1.msra.mxu0 0.0
    %223 = vmatprep.subr.mxu0 0.0
    %224 = vmatpush1.msra.mxu0 0.0
    %225 = vmatprep.subr.mxu0 0.0
    %226 = vmatpush1.msra.mxu0 0.0
    %227 = vmatprep.subr.mxu0 0.0
    %228 = vmatpush1.msra.mxu0 0.0
    %229 = vmatprep.subr.mxu0 0.0
    %230 = vmatpush1.msra.mxu0 0.0
    %231 = vmatprep.subr.mxu0 0.0
    %232 = vmatpush1.msra.mxu0 0.0
    %233 = vmatprep.subr.mxu0 0.0
    %234 = vmatpush1.msra.mxu0 0.0
    %235 = vmatprep.subr.mxu0 0.0
    %236 = vmatpush1.msra.mxu0 0.0
    %237 = vmatprep.subr.mxu0 0.0
    %238 = vmatpush1.msra.mxu0 0.0
    %239 = vmatprep.subr.mxu0 0.0
    %240 = vmatpush1.msra.mxu0 0.0
    %241 = vmatprep.subr.mxu0 0.0
    %242 = vmatpush1.msra.mxu0 0.0
    %243 = vmatprep.subr.mxu0 0.0
    %244 = vmatpush1.msra.mxu0 0.0
    %245 = vmatprep.subr.mxu0 0.0
    %246 = vmatpush1.msra.mxu0 0.0
    %247 = vmatprep.subr.mxu0 0.0
    %248 = vmatpush1.msra.mxu0 0.0
    %249 = vmatprep.subr.mxu0 0.0
    %250 = vmatpush1.msra.mxu0 0.0
    %251 = vmatprep.subr.mxu0 0.0
    %252 = vmatpush1.msra.mxu0 0.0
    %253 = vmatprep.subr.mxu0 0.0
    %254 = vmatpush1.msra.mxu0 0.0
    %255 = vmatprep.subr.mxu0 0.0
    %256 = vmatpush1.msra.mxu0 0.0
    %257 = vmatprep.subr.mxu0 0.0
    %258 = vmatpush1.msra.mxu0 0.0
    %259 = vmatprep.subr.mxu0 0.0
    %260 = vmatpush1.msra.mxu0 0.0
    %261 = vmatprep.subr.mxu0 0.0
    %262 = vmatpush1.msra.mxu0 0.0
    %263 = vmatprep.subr.mxu0 0.0
    %264 = vmatpush1.msra.mxu0 0.0
    %265 = vmatprep.subr.mxu0 0.0
    %266 = vmatpush1.msra.mxu0 0.0
    %267 = vmatprep.subr.mxu0 0.0
    %268 = vmatpush1.msra.mxu0 0.0
    %269 = vmatprep.subr.mxu0 0.0
    %270 = vmatpush1.msra.mxu0 0.0
    %271 = vmatprep.subr.mxu0 0.0
    %272 = vmatpush1.msra.mxu0 0.0
    %273 = vmatprep.subr.mxu0 0.0
    %274 = vmatpush1.msra.mxu0 0.0
    %275 = vmatprep.mubr.f32.mxu0 0.0
    %276 = vmatmul.mubr.f32.gmra.mrb[0].mxu0 %v206
    %v277 = vpop.f32.mrb[0].mxu0
    %v278 = vadd.f32 %v204, %v277
    %v279 = vpop.f32.mrb[0].mxu0
    %280 = vmatprep.mubr.f32.mxu0 0.0
    %281 = vmatmul.mubr.f32.gmra.mrb[0].mxu0 %v209
    %v282 = vpop.f32.mrb[0].mxu0
    %v283 = vadd.f32 %v204, %v282
    %v284 = vpop.f32.mrb[0].mxu0
    %285 = vdwg.mxu0
    %v286 = vmul.f32 %v278, 1.442695
    %v287 = vpow.pop %v286
    %vm288 = vcmask 523521
    %v289 = vsel %vm288, %v278, -inf
    %290 = vmax.xlane.f32.xlu0 %v289
    %v291 = vpop.xlane.xlu0 %290
    %vm292 = vcmask 516352
    %v293 = vsel %vm292, %v283, -inf
    %294 = vmax.xlane.f32.xlu0 %v293
    %v295 = vpop.xlane.xlu0 %294
    %v296 = vsub.f32 %v278, %v291
    %v297 = vsub.f32 %v283, %v295
    %v298 = vmul.f32 %v296, 1.442695
    %v299 = vpow.pop %v298
    %v300 = vmul.f32 %v297, 1.442695
    %v301 = vpow.pop %v300
    %304 = vrot.lane.b32.xlu0 %v299, 96
    %v305 = vpop.permute.xlu0 %304
    %306 = vrot.lane.b32.xlu0 %v301, 96
    %v307 = vpop.permute.xlu0 %306
    %vm310 = vcmask 261121
    %v311 = vsel %vm310, %v305, 0.0
    %312 = vadd.xlane.f32.xlu0 %v311
    %v313 = vpop.xlane.xlu0 %312
    %vm314 = vcmask 253952
    %v315 = vsel %vm314, %v307, 0.0
    %316 = vadd.xlane.f32.xlu0 %v315
    %v317 = vpop.xlane.xlu0 %316
    %v318 = vrcp.pop %v313
    %v319 = vrcp.pop %v317
    %v320 = vmul.f32 %v299, %v318
    %v321 = vmul.f32 %v301, %v319
    %v323 = vrot.slane %v26, 7
    %324 = vrot.lane.b32.xlu0 %v323, 32
    %v325 = vpop.permute.xlu0 %324
    %v327 = vadd.f32 %v320, %v325
    %v328 = vadd.f32 %v321, %v325
    %v329 = vsel %vm288, %v327, -inf
    %330 = vmax.xlane.f32.xlu0 %v329
    %v331 = vpop.xlane.xlu0 %330
    %v332 = vsel %vm292, %v328, -inf
    %333 = vmax.xlane.f32.xlu0 %v332
    %v334 = vpop.xlane.xlu0 %333
    %v335 = vlaneseq
    %v336 = vand.u32 %v335, 127
    %vm337 = vcmp.eq.f32.partialorder %v327, %v331
    %vm338 = vcmp.eq.f32.partialorder %v328, %v334
    %339 = vrot.lane.b32.xlu0 %v336, 32
    %v340 = vpop.permute.xlu0 %339
    %v341 = vsel %vm337, %v340, 32
    %v342 = vsel %vm338, %v340, 32
    %v343 = vsel %vm288, %v341, 2147483647
    %v344 = vand.u32 %v343, 65535
    %v345 = vshra.s32 %v343, 16
    %v346 = vcvt.s32.f32 %v344
    %v347 = vcvt.s32.f32 %v345
    %348 = vmin.xlane.f32.xlu0 %v347
    %v349 = vpop.xlane.xlu0 %348
    %vm350 = vcmp.eq.f32.partialorder %v347, %v349
    %v351 = vsel %vm350, %v346, inf
    %352 = vmin.xlane.f32.xlu0 %v351
    %v353 = vpop.xlane.xlu0 %352
    %v354 = vcvt.f32.s32 %v353
    %v355 = vcvt.f32.s32 %v349
    %v356 = vshll.u32 %v355, 16
    %v357 = vadd.s32 %v356, %v354
    %v358 = vsel %vm292, %v342, 2147483647
    %v359 = vand.u32 %v358, 65535
    %v360 = vshra.s32 %v358, 16
    %v361 = vcvt.s32.f32 %v359
    %v362 = vcvt.s32.f32 %v360
    %363 = vmin.xlane.f32.xlu0 %v362
    %v364 = vpop.xlane.xlu0 %363
    %vm365 = vcmp.eq.f32.partialorder %v362, %v364
    %v366 = vsel %vm365, %v361, inf
    %367 = vmin.xlane.f32.xlu0 %v366
    %v368 = vpop.xlane.xlu0 %367
    %v369 = vcvt.f32.s32 %v368
    %v370 = vcvt.f32.s32 %v364
    %v371 = vshll.u32 %v370, 16
    %v372 = vadd.s32 %v371, %v369
    %vm373 = vcmp.eq.s32.totalorder %v336, %v357
    %vm374 = vcmp.eq.s32.totalorder %v336, %v372
    %v375 = vsel %vm373, 1, 0
    %v376 = vsel %vm374, 1, 0
    %v377 = vcvt.s32.f32 %v375
    %v378 = vcvt.s32.f32 %v376
    %vm381 = vcmask 1046528
    %v382 = vrot.slane %v377, 1
    %v383 = vrot.slane %v378, 1
    %v384 = vsel %vm381, %v382, %v383
    %v386 = vsel %vm33, %v384, 0.0
    %v387 = vrot.slane %v386, 4
    %v388 = vadd.f32 %v386, %v387
    %v389 = vrot.slane %v388, 2
    %v390 = vadd.f32 %v388, %v389
    %v391 = vrot.slane %v390, 1
    %v392 = vadd.f32 %v390, %v391
    %v393 = vmul.f32 %v287, %v392
    %v394 = vsel %vm314, %v393, 0.0
    %395 = vadd.xlane.f32.xlu0 %v394
    %v396 = vpop.xlane.xlu0 %395
    %v397 = vrot.slane %v396, 4
    %v398 = vadd.f32 %v396, %v397
    %v399 = vrot.slane %v398, 2
    %v400 = vadd.f32 %v398, %v399
    %v401 = vrot.slane %v400, 1
    %v402 = vadd.f32 %v400, %v401
    %s403 = vtos %v402
    %v404 = vstv %s403
    %v405 = vrcp.pop %v404
    %v406 = vmul.f32 %v393, %v405
    %407 = vst.msk [vmem:[#allocation2] sm:$0x1] %vm314, %v406
    // Predicated region
    $region14: #{snn_forward.1} parent=1 // pred_check
      _
    $region15: #{snn_forward.1} parent=1 // pred_check_branch
      %409 = sbr.rel (0) target = $region17
    $region16: #{snn_forward.1} parent=1 // pred_region
      %s411 = ssub.s32 16, 16
      %412 = vsyncadd [#allocation3], %s411
      %s414 = sshll.u32 [#allocation2], 4
      %s415 = int_to_ptr.vmem [resolvable:$true] %s414
      %417 = dma.vmem_to_hbm [thread:$0]  %s415, 16, %s3, [#allocation3]
    $region17: #{snn_forward.1} parent=1 // pred_fallthru
      _
    // Predicated region
    $region18: #{snn_forward.1} parent=1 // pred_check
      _
    $region19: #{snn_forward.1} parent=1 // pred_check_branch
      %419 = sbr.rel (0) target = $region21
    $region20: #{snn_forward.1} parent=1 // pred_region
      %420 = dma.done [#allocation3], 16
    $region21: #{snn_forward.1} parent=1 // pred_fallthru
      _
    %421 = vsyncpa [#allocation3], 1

</llo_original>
